<compile_context>
chip_gen: v7x
topology: tpu7x:2x2x1
jax: 0.10.0
libtpu: 0.0.40
codegen_flags: <defaults>
</compile_context>

<pallas_src>
import jax
import jax.numpy as jnp
from jax import lax
from jax.experimental import pallas as pl
from jax.experimental.pallas import tpu as pltpu

LANES = 128  # pad the 20-wide feature dim to one full lane tile


def fancy_mlp_kernel(x_ref, wt_ref, b_ref, r_ref, out_ref):
    x = x_ref[...]    # (B, 128)   zero-padded input rows
    wt = wt_ref[...]  # (128, 128) W^T, zero-padded
    b = b_ref[...]    # (1, 128)   bias, zero-padded
    r = r_ref[...]    # (128, 128) fixed rand_weight, zero-padded

    # x = self.linear(x)                       (contract on W^T directly)
    h1 = jnp.dot(x, wt, preferred_element_type=jnp.float32) + b
    # x = relu(x @ rand_weight + 1)
    h2 = jnp.maximum(jnp.dot(h1, r, preferred_element_type=jnp.float32) + 1.0, 0.0)
    # x = self.linear(x)                       (same shared layer again)
    h3 = jnp.dot(h2, wt, preferred_element_type=jnp.float32) + b

    norm2 = jnp.sum(h3 * h3)   # ||h3||_F^2  (padded entries are exactly 0)
    total = jnp.sum(h3)        # h3.sum()

    # while x.norm() > 1: x /= 2
    #   uniform rescale -> scalar scale;  norm > 1 <=> norm^2 > 1;
    #   x /= 2  <=>  norm^2 /= 4  (exact in f32: exponent decrement)
    def cond(carry):
        n2, _ = carry
        return n2 > 1.0

    def body(carry):
        n2, s = carry
        return n2 * 0.25, s * 0.5

    n2_f, scale = lax.while_loop(cond, body, (norm2, jnp.float32(1.0)))

    # if x.norm() < 0.8: x *= 10   (<=> norm^2 < 0.64)
    scale = jnp.where(n2_f < jnp.float32(0.64), scale * 10.0, scale)

    # return x.sum()  (sum is linear, so the scale factors through)
    out_ref[0] = total * scale


@jax.jit
def fancy_mlp_forward(x, w, b, r):
    B, F = x.shape
    Fp = LANES

    # Layout plumbing in the wrapper (free): pre-transpose W and zero-pad the
    # feature dimension to a full 128-lane tile so the kernel is lane-dense.
    xp = jnp.zeros((B, Fp), jnp.float32).at[:, :F].set(x)
    wt = jnp.zeros((Fp, Fp), jnp.float32).at[:F, :F].set(w.T)
    bp = jnp.zeros((1, Fp), jnp.float32).at[0, :F].set(b)
    rp = jnp.zeros((Fp, Fp), jnp.float32).at[:F, :F].set(r)

    vmem = pl.BlockSpec(memory_space=pltpu.MemorySpace.VMEM)
    out = pl.pallas_call(
        fancy_mlp_kernel,
        out_shape=jax.ShapeDtypeStruct((1,), jnp.float32),
        in_specs=[vmem, vmem, vmem, vmem],
        out_specs=pl.BlockSpec(memory_space=pltpu.MemorySpace.SMEM),
    )(xp, wt, bp, rp)
    # Single scalar result, no dead activation output, no post-kernel XLA ops.
    return out[0]
    # TODO(synk): for large batch, add a batch grid (BlockSpec((TB, LANES), ...),
    # dimension_semantics=("parallel",)) with per-tile partial norm2/sum.


if __name__ == "__main__":
    key = jax.random.PRNGKey(0)
    k_x, k_w, k_b, k_r = jax.random.split(key, 4)

    B, F = 2, 20
    x = jax.random.normal(k_x, (B, F), dtype=jnp.float32)

    # nn.Linear(20, 20): weight (20, 20), bias (20,), uniform(-1/sqrt(20), 1/sqrt(20))
    bound = 1.0 / jnp.sqrt(jnp.float32(F))
    w = jax.random.uniform(k_w, (F, F), dtype=jnp.float32, minval=-bound, maxval=bound)
    b = jax.random.uniform(k_b, (F,), dtype=jnp.float32, minval=-bound, maxval=bound)
    # torch.rand((20, 20)): uniform [0, 1)
    r = jax.random.uniform(k_r, (F, F), dtype=jnp.float32, minval=0.0, maxval=1.0)

    out = fancy_mlp_forward(x, w, b, r)
    jax.block_until_ready(out)

    # Pure-JAX / Python reference mirroring the PyTorch forward exactly.
    h1 = x @ w.T + b
    h2 = jnp.maximum(h1 @ r + 1.0, 0.0)
    h3 = h2 @ w.T + b
    n = float(jnp.linalg.norm(h3))
    sc = 1.0
    while n > 1.0:
        n *= 0.5
        sc *= 0.5
    if n < 0.8:
        sc *= 10.0
    ref = float(jnp.sum(h3)) * sc

    assert jnp.allclose(out, jnp.float32(ref), rtol=1e-4, atol=1e-4), (float(out), ref)

    print("KERNEL_OK")
</pallas_src>

<mosaic_0001>
module attributes {stable_mosaic.version = 11 : i64} {
  func.func @fancy_mlp_kernel(%arg0: memref<2x128xf32, #tpu.memory_space<vmem>>, %arg1: memref<128x128xf32, #tpu.memory_space<vmem>>, %arg2: memref<1x128xf32, #tpu.memory_space<vmem>>, %arg3: memref<128x128xf32, #tpu.memory_space<vmem>>, %arg4: memref<1xf32, #tpu.memory_space<smem>>) attributes {dimension_semantics = [], scalar_prefetch = 0 : i64, scratch_operands = 0 : i64, tpu.core_type = #tpu.core_type<tc>} {
    %c0 = arith.constant 0 : index
    %c0_0 = arith.constant 0 : index
    %0 = vector.load %arg0[%c0, %c0_0] : memref<2x128xf32, #tpu.memory_space<vmem>>, vector<2x128xf32>
    %c0_1 = arith.constant 0 : index
    %c0_2 = arith.constant 0 : index
    %1 = vector.load %arg1[%c0_1, %c0_2] : memref<128x128xf32, #tpu.memory_space<vmem>>, vector<128x128xf32>
    %c0_3 = arith.constant 0 : index
    %c0_4 = arith.constant 0 : index
    %2 = vector.load %arg2[%c0_3, %c0_4] : memref<1x128xf32, #tpu.memory_space<vmem>>, vector<1x128xf32>
    %c0_5 = arith.constant 0 : index
    %c0_6 = arith.constant 0 : index
    %3 = vector.load %arg3[%c0_5, %c0_6] : memref<128x128xf32, #tpu.memory_space<vmem>>, vector<128x128xf32>
    %cst = arith.constant dense<0.000000e+00> : vector<2x128xf32>
    %4 = tpu.matmul %0, %1, %cst {dimension_numbers = #tpu.dot_dimension_numbers<[1], [0], [0], [1], [0, 0, 1, 1], [], []>} : vector<2x128xf32>, vector<128x128xf32>, vector<2x128xf32> -> vector<2x128xf32>
    %5 = vector.broadcast %2 : vector<1x128xf32> to vector<2x128xf32>
    %6 = arith.addf %4, %5 : vector<2x128xf32>
    %cst_7 = arith.constant dense<0.000000e+00> : vector<2x128xf32>
    %7 = tpu.matmul %6, %3, %cst_7 {dimension_numbers = #tpu.dot_dimension_numbers<[1], [0], [0], [1], [0, 0, 1, 1], [], []>} : vector<2x128xf32>, vector<128x128xf32>, vector<2x128xf32> -> vector<2x128xf32>
    %cst_8 = arith.constant 1.000000e+00 : f32
    %8 = vector.broadcast %cst_8 : f32 to vector<2x128xf32>
    %9 = arith.addf %7, %8 : vector<2x128xf32>
    %cst_9 = arith.constant 0.000000e+00 : f32
    %10 = vector.broadcast %cst_9 : f32 to vector<2x128xf32>
    %11 = arith.maximumf %9, %10 : vector<2x128xf32>
    %cst_10 = arith.constant dense<0.000000e+00> : vector<2x128xf32>
    %12 = tpu.matmul %11, %1, %cst_10 {dimension_numbers = #tpu.dot_dimension_numbers<[1], [0], [0], [1], [0, 0, 1, 1], [], []>} : vector<2x128xf32>, vector<128x128xf32>, vector<2x128xf32> -> vector<2x128xf32>
    %13 = vector.broadcast %2 : vector<1x128xf32> to vector<2x128xf32>
    %14 = arith.addf %12, %13 : vector<2x128xf32>
    %15 = arith.mulf %14, %14 : vector<2x128xf32>
    %16 = vector.shape_cast %15 : vector<2x128xf32> to vector<1x2x128xf32>
    %cst_11 = arith.constant dense<0.000000e+00> : vector<1xf32>
    %17 = vector.multi_reduction <add>, %16, %cst_11 [1, 2] : vector<1x2x128xf32> to vector<1xf32>
    %18 = vector.shape_cast %17 : vector<1xf32> to vector<1x1x1xf32>
    %19 = vector.extract %18[0, 0, 0] : f32 from vector<1x1x1xf32>
    %20 = vector.shape_cast %14 : vector<2x128xf32> to vector<1x2x128xf32>
    %cst_12 = arith.constant dense<0.000000e+00> : vector<1xf32>
    %21 = vector.multi_reduction <add>, %20, %cst_12 [1, 2] : vector<1x2x128xf32> to vector<1xf32>
    %22 = vector.shape_cast %21 : vector<1xf32> to vector<1x1x1xf32>
    %23 = vector.extract %22[0, 0, 0] : f32 from vector<1x1x1xf32>
    %cst_13 = arith.constant 1.000000e+00 : f32
    %24:2 = scf.while (%arg5 = %19, %arg6 = %cst_13) : (f32, f32) -> (f32, f32) {
      %cst_17 = arith.constant 1.000000e+00 : f32
      %30 = arith.cmpf ogt, %arg5, %cst_17 : f32
      scf.condition(%30) %arg5, %arg6 : f32, f32
    } do {
    ^bb0(%arg5: f32, %arg6: f32):
      %cst_17 = arith.constant 2.500000e-01 : f32
      %30 = arith.mulf %arg5, %cst_17 : f32
      %cst_18 = arith.constant 5.000000e-01 : f32
      %31 = arith.mulf %arg6, %cst_18 : f32
      scf.yield %30, %31 : f32, f32
    }
    %cst_14 = arith.constant 6.400000e-01 : f32
    %25 = arith.cmpf olt, %24#0, %cst_14 : f32
    %cst_15 = arith.constant 1.000000e+01 : f32
    %26 = arith.mulf %24#1, %cst_15 : f32
    %27 = arith.select %25, %26, %24#1 : f32
    %28 = arith.mulf %23, %27 : f32
    %c0_16 = arith.constant 0 : index
    %29 = memref.load %arg4[%c0_16] : memref<1xf32, #tpu.memory_space<smem>>
    memref.store %28, %arg4[%c0_16] : memref<1xf32, #tpu.memory_space<smem>>
    return
  }
}

</mosaic_0001>

<llo_original>
// kernel: fancy_mlp_forward.1
$region0: #{fancy_mlp_forward.1}
  #allocation0 [shape = 'u32[]', space=smem, size = 0x4, offset = 0x4, fixed_abs, tag = 'smem constant byte address 0x4 - core index']
  #allocation1 [shape = 'u32[144,128]{1,0:T(1,128)}', space=vmem, size = 0x12000, scoped, tag = 'internal scratch']
  %s0 = inlined_call_operand.vmem [shape: f32[2,128], index: 0, kind: input, shape index: {}]
  %s1 = inlined_call_operand.vmem [shape: f32[128,128], index: 1, kind: input, shape index: {}]
  %s2 = inlined_call_operand.vmem [shape: f32[1,128], index: 2, kind: input, shape index: {}]
  %s3 = inlined_call_operand.vmem [shape: f32[128,128], index: 3, kind: input, shape index: {}]
  %s4 = inlined_call_operand.hbm [shape: f32[1], index: 4, kind: output, shape index: {}]
  %s5 = sld [smem:[#allocation0]]
  $region33: #{fancy_mlp_forward.1} parent=0
    _
  %s7 = ssub.s32 1, %s5
  %s8 = scalar_select 0, %s7, %s5
  $region1: #{fancy_mlp_forward.1} parent=0
    #allocation2 [shape = 'u8[512]{0}', space=smem, size = 0x200, scoped, tag = 'output window, operand 0, single buffered']
    #allocation3 [shape = 's32[1]{0}', space=sflag, size = 0x4, scoped, tag = 'scoped memory for fancy_mlp_forward.1']
    %9 = vsyncpa [#allocation3], 0
    // Predicated region
    $region2: #{fancy_mlp_forward.1} parent=1 // pred_check
      _
    $region3: #{fancy_mlp_forward.1} parent=1 // pred_check_branch
      %11 = sbr.rel (0) target = $region5
    $region4: #{fancy_mlp_forward.1} parent=1 // pred_region
      _
    $region5: #{fancy_mlp_forward.1} parent=1 // pred_fallthru
      _
    // Predicated region
    $region6: #{fancy_mlp_forward.1} parent=1 // pred_check
      _
    $region7: #{fancy_mlp_forward.1} parent=1 // pred_check_branch
      %13 = sbr.rel (0) target = $region9
    $region8: #{fancy_mlp_forward.1} parent=1 // pred_region
      _
    $region9: #{fancy_mlp_forward.1} parent=1 // pred_fallthru
      _
    // Predicated region
    $region10: #{fancy_mlp_forward.1} parent=1 // pred_check
      _
    $region11: #{fancy_mlp_forward.1} parent=1 // pred_check_branch
      %15 = sbr.rel (0) target = $region13
    $region12: #{fancy_mlp_forward.1} parent=1 // pred_region
      _
    $region13: #{fancy_mlp_forward.1} parent=1 // pred_fallthru
      _
    // Predicated region
    $region14: #{fancy_mlp_forward.1} parent=1 // pred_check
      _
    $region15: #{fancy_mlp_forward.1} parent=1 // pred_check_branch
      %17 = sbr.rel (0) target = $region17
    $region16: #{fancy_mlp_forward.1} parent=1 // pred_region
      _
    $region17: #{fancy_mlp_forward.1} parent=1 // pred_fallthru
      _
    %v18 = vld [vmem:[%s0] sm:$0x3]
    %v19 = vld [vmem:[%s1] sm:$0xff]
    %v20 = vld [vmem:[%s1 + $0x8] sm:$0xff]
    %v21 = vld [vmem:[%s1 + $0x10] sm:$0xff]
    %v22 = vld [vmem:[%s1 + $0x18] sm:$0xff]
    %v23 = vld [vmem:[%s1 + $0x20] sm:$0xff]
    %v24 = vld [vmem:[%s1 + $0x28] sm:$0xff]
    %v25 = vld [vmem:[%s1 + $0x30] sm:$0xff]
    %v26 = vld [vmem:[%s1 + $0x38] sm:$0xff]
    %v27 = vld [vmem:[%s1 + $0x40] sm:$0xff]
    %v28 = vld [vmem:[%s1 + $0x48] sm:$0xff]
    %v29 = vld [vmem:[%s1 + $0x50] sm:$0xff]
    %v30 = vld [vmem:[%s1 + $0x58] sm:$0xff]
    %v31 = vld [vmem:[%s1 + $0x60] sm:$0xff]
    %v32 = vld [vmem:[%s1 + $0x68] sm:$0xff]
    %v33 = vld [vmem:[%s1 + $0x70] sm:$0xff]
    %v34 = vld [vmem:[%s1 + $0x78] sm:$0xff]
    %v35 = vld [vmem:[%s2] sm:$0x1]
    %v36 = vld [vmem:[%s3] sm:$0xff]
    %v37 = vld [vmem:[%s3 + $0x8] sm:$0xff]
    %v38 = vld [vmem:[%s3 + $0x10] sm:$0xff]
    %v39 = vld [vmem:[%s3 + $0x18] sm:$0xff]
    %v40 = vld [vmem:[%s3 + $0x20] sm:$0xff]
    %v41 = vld [vmem:[%s3 + $0x28] sm:$0xff]
    %v42 = vld [vmem:[%s3 + $0x30] sm:$0xff]
    %v43 = vld [vmem:[%s3 + $0x38] sm:$0xff]
    %v44 = vld [vmem:[%s3 + $0x40] sm:$0xff]
    %v45 = vld [vmem:[%s3 + $0x48] sm:$0xff]
    %v46 = vld [vmem:[%s3 + $0x50] sm:$0xff]
    %v47 = vld [vmem:[%s3 + $0x58] sm:$0xff]
    %v48 = vld [vmem:[%s3 + $0x60] sm:$0xff]
    %v49 = vld [vmem:[%s3 + $0x68] sm:$0xff]
    %v50 = vld [vmem:[%s3 + $0x70] sm:$0xff]
    %v51 = vld [vmem:[%s3 + $0x78] sm:$0xff]
    %v53 = vlaneseq
    %v54 = vshrl.u32 %v53, 7
    %v55 = vsub.s32 0, %v54
    %v56 = vrot.slane %v35, %v55
    %58 = vmatprep.subr.mxu0 0.0
    %59 = vmatpush1.msra.mxu0 %v19
    %60 = vmatprep.subr.mxu0 0.0
    %61 = vmatpush1.msra.mxu0 %v20
    %62 = vmatprep.subr.mxu0 0.0
    %63 = vmatpush1.msra.mxu0 %v21
    %64 = vmatprep.subr.mxu0 0.0
    %65 = vmatpush1.msra.mxu0 %v22
    %66 = vmatprep.subr.mxu0 0.0
    %67 = vmatpush1.msra.mxu0 %v23
    %68 = vmatprep.subr.mxu0 0.0
    %69 = vmatpush1.msra.mxu0 %v24
    %70 = vmatprep.subr.mxu0 0.0
    %71 = vmatpush1.msra.mxu0 %v25
    %72 = vmatprep.subr.mxu0 0.0
    %73 = vmatpush1.msra.mxu0 %v26
    %74 = vmatprep.subr.mxu0 0.0
    %75 = vmatpush1.msra.mxu0 %v27
    %76 = vmatprep.subr.mxu0 0.0
    %77 = vmatpush1.msra.mxu0 %v28
    %78 = vmatprep.subr.mxu0 0.0
    %79 = vmatpush1.msra.mxu0 %v29
    %80 = vmatprep.subr.mxu0 0.0
    %81 = vmatpush1.msra.mxu0 %v30
    %82 = vmatprep.subr.mxu0 0.0
    %83 = vmatpush1.msra.mxu0 %v31
    %84 = vmatprep.subr.mxu0 0.0
    %85 = vmatpush1.msra.mxu0 %v32
    %86 = vmatprep.subr.mxu0 0.0
    %87 = vmatpush1.msra.mxu0 %v33
    %88 = vmatprep.subr.mxu0 0.0
    %89 = vmatpush1.msra.mxu0 %v34
    %90 = vmatprep.subr.mxu0 0.0
    %91 = vmatpush1.msra.mxu0 0.0
    %92 = vmatprep.subr.mxu0 0.0
    %93 = vmatpush1.msra.mxu0 0.0
    %94 = vmatprep.subr.mxu0 0.0
    %95 = vmatpush1.msra.mxu0 0.0
    %96 = vmatprep.subr.mxu0 0.0
    %97 = vmatpush1.msra.mxu0 0.0
    %98 = vmatprep.subr.mxu0 0.0
    %99 = vmatpush1.msra.mxu0 0.0
    %100 = vmatprep.subr.mxu0 0.0
    %101 = vmatpush1.msra.mxu0 0.0
    %102 = vmatprep.subr.mxu0 0.0
    %103 = vmatpush1.msra.mxu0 0.0
    %104 = vmatprep.subr.mxu0 0.0
    %105 = vmatpush1.msra.mxu0 0.0
    %106 = vmatprep.subr.mxu0 0.0
    %107 = vmatpush1.msra.mxu0 0.0
    %108 = vmatprep.subr.mxu0 0.0
    %109 = vmatpush1.msra.mxu0 0.0
    %110 = vmatprep.subr.mxu0 0.0
    %111 = vmatpush1.msra.mxu0 0.0
    %112 = vmatprep.subr.mxu0 0.0
    %113 = vmatpush1.msra.mxu0 0.0
    %114 = vmatprep.subr.mxu0 0.0
    %115 = vmatpush1.msra.mxu0 0.0
    %116 = vmatprep.subr.mxu0 0.0
    %117 = vmatpush1.msra.mxu0 0.0
    %118 = vmatprep.subr.mxu0 0.0
    %119 = vmatpush1.msra.mxu0 0.0
    %120 = vmatprep.subr.mxu0 0.0
    %121 = vmatpush1.msra.mxu0 0.0
    %122 = vmatprep.mubr.f32.mxu0 0.0
    %123 = vmatmul.mubr.f32.gmra.mrb[0].mxu0 %v18
    %v124 = vpop.f32.mrb[0].mxu0
    %v125 = vadd.f32 %v56, %v124
    %v126 = vpop.f32.mrb[0].mxu0
    %127 = vdwg.mxu0
    %128 = vmatprep.subr.mxu0 0.0
    %129 = vmatpush1.msra.mxu0 %v36
    %130 = vmatprep.subr.mxu0 0.0
    %131 = vmatpush1.msra.mxu0 %v37
    %132 = vmatprep.subr.mxu0 0.0
    %133 = vmatpush1.msra.mxu0 %v38
    %134 = vmatprep.subr.mxu0 0.0
    %135 = vmatpush1.msra.mxu0 %v39
    %136 = vmatprep.subr.mxu0 0.0
    %137 = vmatpush1.msra.mxu0 %v40
    %138 = vmatprep.subr.mxu0 0.0
    %139 = vmatpush1.msra.mxu0 %v41
    %140 = vmatprep.subr.mxu0 0.0
    %141 = vmatpush1.msra.mxu0 %v42
    %142 = vmatprep.subr.mxu0 0.0
    %143 = vmatpush1.msra.mxu0 %v43
    %144 = vmatprep.subr.mxu0 0.0
    %145 = vmatpush1.msra.mxu0 %v44
    %146 = vmatprep.subr.mxu0 0.0
    %147 = vmatpush1.msra.mxu0 %v45
    %148 = vmatprep.subr.mxu0 0.0
    %149 = vmatpush1.msra.mxu0 %v46
    %150 = vmatprep.subr.mxu0 0.0
    %151 = vmatpush1.msra.mxu0 %v47
    %152 = vmatprep.subr.mxu0 0.0
    %153 = vmatpush1.msra.mxu0 %v48
    %154 = vmatprep.subr.mxu0 0.0
    %155 = vmatpush1.msra.mxu0 %v49
    %156 = vmatprep.subr.mxu0 0.0
    %157 = vmatpush1.msra.mxu0 %v50
    %158 = vmatprep.subr.mxu0 0.0
    %159 = vmatpush1.msra.mxu0 %v51
    %160 = vmatprep.subr.mxu0 0.0
    %161 = vmatpush1.msra.mxu0 0.0
    %162 = vmatprep.subr.mxu0 0.0
    %163 = vmatpush1.msra.mxu0 0.0
    %164 = vmatprep.subr.mxu0 0.0
    %165 = vmatpush1.msra.mxu0 0.0
    %166 = vmatprep.subr.mxu0 0.0
    %167 = vmatpush1.msra.mxu0 0.0
    %168 = vmatprep.subr.mxu0 0.0
    %169 = vmatpush1.msra.mxu0 0.0
    %170 = vmatprep.subr.mxu0 0.0
    %171 = vmatpush1.msra.mxu0 0.0
    %172 = vmatprep.subr.mxu0 0.0
    %173 = vmatpush1.msra.mxu0 0.0
    %174 = vmatprep.subr.mxu0 0.0
    %175 = vmatpush1.msra.mxu0 0.0
    %176 = vmatprep.subr.mxu0 0.0
    %177 = vmatpush1.msra.mxu0 0.0
    %178 = vmatprep.subr.mxu0 0.0
    %179 = vmatpush1.msra.mxu0 0.0
    %180 = vmatprep.subr.mxu0 0.0
    %181 = vmatpush1.msra.mxu0 0.0
    %182 = vmatprep.subr.mxu0 0.0
    %183 = vmatpush1.msra.mxu0 0.0
    %184 = vmatprep.subr.mxu0 0.0
    %185 = vmatpush1.msra.mxu0 0.0
    %186 = vmatprep.subr.mxu0 0.0
    %187 = vmatpush1.msra.mxu0 0.0
    %188 = vmatprep.subr.mxu0 0.0
    %189 = vmatpush1.msra.mxu0 0.0
    %190 = vmatprep.subr.mxu0 0.0
    %191 = vmatpush1.msra.mxu0 0.0
    %192 = vmatprep.mubr.f32.mxu0 0.0
    %193 = vmatmul.mubr.f32.gmra.mrb[0].mxu0 %v125
    %v194 = vpop.f32.mrb[0].mxu0
    %v195 = vadd.f32 1.0, %v194
    %v196 = vpop.f32.mrb[0].mxu0
    %197 = vdwg.mxu0
    %v198 = vmax.f32 %v195, 0.0
    %199 = vmatprep.subr.mxu0 0.0
    %200 = vmatpush1.msra.mxu0 %v19
    %201 = vmatprep.subr.mxu0 0.0
    %202 = vmatpush1.msra.mxu0 %v20
    %203 = vmatprep.subr.mxu0 0.0
    %204 = vmatpush1.msra.mxu0 %v21
    %205 = vmatprep.subr.mxu0 0.0
    %206 = vmatpush1.msra.mxu0 %v22
    %207 = vmatprep.subr.mxu0 0.0
    %208 = vmatpush1.msra.mxu0 %v23
    %209 = vmatprep.subr.mxu0 0.0
    %210 = vmatpush1.msra.mxu0 %v24
    %211 = vmatprep.subr.mxu0 0.0
    %212 = vmatpush1.msra.mxu0 %v25
    %213 = vmatprep.subr.mxu0 0.0
    %214 = vmatpush1.msra.mxu0 %v26
    %215 = vmatprep.subr.mxu0 0.0
    %216 = vmatpush1.msra.mxu0 %v27
    %217 = vmatprep.subr.mxu0 0.0
    %218 = vmatpush1.msra.mxu0 %v28
    %219 = vmatprep.subr.mxu0 0.0
    %220 = vmatpush1.msra.mxu0 %v29
    %221 = vmatprep.subr.mxu0 0.0
    %222 = vmatpush1.msra.mxu0 %v30
    %223 = vmatprep.subr.mxu0 0.0
    %224 = vmatpush1.msra.mxu0 %v31
    %225 = vmatprep.subr.mxu0 0.0
    %226 = vmatpush1.msra.mxu0 %v32
    %227 = vmatprep.subr.mxu0 0.0
    %228 = vmatpush1.msra.mxu0 %v33
    %229 = vmatprep.subr.mxu0 0.0
    %230 = vmatpush1.msra.mxu0 %v34
    %231 = vmatprep.subr.mxu0 0.0
    %232 = vmatpush1.msra.mxu0 0.0
    %233 = vmatprep.subr.mxu0 0.0
    %234 = vmatpush1.msra.mxu0 0.0
    %235 = vmatprep.subr.mxu0 0.0
    %236 = vmatpush1.msra.mxu0 0.0
    %237 = vmatprep.subr.mxu0 0.0
    %238 = vmatpush1.msra.mxu0 0.0
    %239 = vmatprep.subr.mxu0 0.0
    %240 = vmatpush1.msra.mxu0 0.0
    %241 = vmatprep.subr.mxu0 0.0
    %242 = vmatpush1.msra.mxu0 0.0
    %243 = vmatprep.subr.mxu0 0.0
    %244 = vmatpush1.msra.mxu0 0.0
    %245 = vmatprep.subr.mxu0 0.0
    %246 = vmatpush1.msra.mxu0 0.0
    %247 = vmatprep.subr.mxu0 0.0
    %248 = vmatpush1.msra.mxu0 0.0
    %249 = vmatprep.subr.mxu0 0.0
    %250 = vmatpush1.msra.mxu0 0.0
    %251 = vmatprep.subr.mxu0 0.0
    %252 = vmatpush1.msra.mxu0 0.0
    %253 = vmatprep.subr.mxu0 0.0
    %254 = vmatpush1.msra.mxu0 0.0
    %255 = vmatprep.subr.mxu0 0.0
    %256 = vmatpush1.msra.mxu0 0.0
    %257 = vmatprep.subr.mxu0 0.0
    %258 = vmatpush1.msra.mxu0 0.0
    %259 = vmatprep.subr.mxu0 0.0
    %260 = vmatpush1.msra.mxu0 0.0
    %261 = vmatprep.subr.mxu0 0.0
    %262 = vmatpush1.msra.mxu0 0.0
    %263 = vmatprep.mubr.f32.mxu0 0.0
    %264 = vmatmul.mubr.f32.gmra.mrb[0].mxu0 %v198
    %v265 = vpop.f32.mrb[0].mxu0
    %v266 = vadd.f32 %v56, %v265
    %v267 = vpop.f32.mrb[0].mxu0
    %268 = vdwg.mxu0
    %v269 = vmul.f32 %v266, %v266
    %vm270 = vcmask 1041408
    %v271 = vsel %vm270, %v269, 0.0
    %272 = vadd.xlane.f32.xlu0 %v271
    %v273 = vpop.xlane.xlu0 %272
    %v274 = vrot.slane %v273, 4
    %v275 = vadd.f32 %v273, %v274
    %v276 = vrot.slane %v275, 2
    %v277 = vadd.f32 %v275, %v276
    %v278 = vrot.slane %v277, 1
    %v279 = vadd.f32 %v277, %v278
    %s280 = vtos %v279
    %v281 = vsel %vm270, %v266, 0.0
    %282 = vadd.xlane.f32.xlu0 %v281
    %v283 = vpop.xlane.xlu0 %282
    %v284 = vrot.slane %v283, 4
    %v285 = vadd.f32 %v283, %v284
    %v286 = vrot.slane %v285, 2
    %v287 = vadd.f32 %v285, %v286
    %v288 = vrot.slane %v287, 1
    %v289 = vadd.f32 %v287, %v288
    %s290 = vtos %v289
    // While loop
    $region18: #{fancy_mlp_forward.1} parent=1 // loop_pre_header
      _
    $region19: #{fancy_mlp_forward.1} parent=1 // loop_header
      %s292 = sphi %s280, %s298
      %s293 = sphi 1.0, %s299
      %p294 = scmp.gt.f32.partialorder %s292, 1.0
      %p295 = pneg %p294
    $region20: #{fancy_mlp_forward.1} parent=1 // loop_header_branch
      %297 = sbr.rel (%p295) target = $region24
    $region21: #{fancy_mlp_forward.1} parent=1 // loop_body
      %s298 = smul.f32 %s292, 0.25
      %s299 = smul.f32 %s293, 0.5
    $region22: #{fancy_mlp_forward.1} parent=1 // loop_footer
      _
    $region23: #{fancy_mlp_forward.1} parent=1 // loop_footer_branch
      %291 = sbr.rel target = $region19
    $region24: #{fancy_mlp_forward.1} parent=1 // loop_exit
      _
    %p300 = scmp.lt.f32.partialorder %s292, 0.64
    %s301 = smul.f32 %s293, 10.0
    %s302 = scalar_select %p300, %s301, %s293
    %s303 = smul.f32 %s290, %s302
    %s304 = scalar_lea.smem [#allocation2], 0
    %305 = sst [smem:[%s304]] %s303
    // Predicated region
    $region25: #{fancy_mlp_forward.1} parent=1 // pred_check
      _
    $region26: #{fancy_mlp_forward.1} parent=1 // pred_check_branch
      %307 = sbr.rel (0) target = $region28
    $region27: #{fancy_mlp_forward.1} parent=1 // pred_region
      %s309 = ssub.s32 16, 16
      %310 = vsyncadd [#allocation3], %s309
      %313 = dma.smem_to_hbm [#allocation2], 16, %s4, [#allocation3]
    $region28: #{fancy_mlp_forward.1} parent=1 // pred_fallthru
      _
    // Predicated region
    $region29: #{fancy_mlp_forward.1} parent=1 // pred_check
      _
    $region30: #{fancy_mlp_forward.1} parent=1 // pred_check_branch
      %315 = sbr.rel (0) target = $region32
    $region31: #{fancy_mlp_forward.1} parent=1 // pred_region
      %316 = dma.done [#allocation3], 16
    $region32: #{fancy_mlp_forward.1} parent=1 // pred_fallthru
      _
    %317 = sfence
    %318 = vsyncpa [#allocation3], 1

</llo_original>
